<compile_context>
chip_gen: v6e
topology: v6e:2x2x1
jax: 0.10.0
libtpu: 0.0.40
codegen_flags: <defaults>
</compile_context>

<pallas_src>
import functools

import jax
import jax.numpy as jnp
from jax import lax
from jax.experimental import pallas as pl
from jax.experimental.pallas import tpu as pltpu

EPS = 1e-5  # PyTorch BatchNorm1d default


def _round_up(x, m):
    return (x + m - 1) // m * m


def _resblock_kernel(xw_ref, w1s_ref, b1_ref, w2c_ref, b2_ref, bs_ref, o_ref,
                     *, tl, l_valid, cout_p):
    # xw_ref  : (1, 1, TL+4, CinP) bf16  -- input tile with 2-row halos
    # w1s_ref : (CinP, 4*CoutP)    bf16  -- [conv1 tap0 | tap1 | tap2 | 1x1 sc]
    # w2c_ref : (CoutP, 3*CoutP)   bf16  -- [conv2 tap0 | tap1 | tap2]
    # b*_ref  : (1, CoutP)         f32   -- BN-folded biases
    # o_ref   : (1, TL, CoutP)     f32
    t = pl.program_id(1)
    xw = xw_ref[0, 0]                                   # (TL+4, CinP)

    # conv1 (3 taps) + 1x1 shortcut fused into a single MXU push.
    y = jnp.dot(xw, w1s_ref[...], preferred_element_type=jnp.float32)
    y0 = y[:, 0 * cout_p:1 * cout_p]
    y1 = y[:, 1 * cout_p:2 * cout_p]
    y2 = y[:, 2 * cout_p:3 * cout_p]
    ys = y[:, 3 * cout_p:4 * cout_p]

    # h over TL+2 rows (global rows t*TL-1 .. t*TL+TL); f32 elementwise.
    h = jnp.maximum(
        y0[0:tl + 2] + y1[1:tl + 3] + y2[2:tl + 4] + b1_ref[...], 0.0)
    # conv2's zero padding / sequence-tail padding: zero h outside [0, L).
    g = t * tl + lax.broadcasted_iota(jnp.int32, (tl + 2, cout_p), 0) - 1
    h = jnp.where((g >= 0) & (g < l_valid), h, 0.0)

    # conv2: 3 taps in a single MXU push.
    z = jnp.dot(h.astype(w2c_ref.dtype), w2c_ref[...],
                preferred_element_type=jnp.float32)
    z0 = z[:, 0 * cout_p:1 * cout_p]
    z1 = z[:, 1 * cout_p:2 * cout_p]
    z2 = z[:, 2 * cout_p:3 * cout_p]
    out = z0[0:tl] + z1[1:tl + 1] + z2[2:tl + 2] + b2_ref[...]

    # shortcut (1x1 conv, same LHS matmul as conv1) + residual add + ReLU.
    idn = ys[2:tl + 2] + bs_ref[...]
    o_ref[0] = jnp.maximum(out + idn, 0.0)


def residual_block_pallas(x_nlc, w1, b1, w2, b2, ws, bs, *, tl=256):
    """x_nlc: (N, L, Cin) f32.  BN-folded params: w1 (3,Cin,Cout),
    w2 (3,Cout,Cout), ws (Cin,Cout), biases (1,Cout).  Returns (N,L,Cout)."""
    N, L, Cin = x_nlc.shape
    Cout = w1.shape[2]
    CinP, CoutP = _round_up(Cin, 128), _round_up(Cout, 128)

    tl = _round_up(max(8, min(tl, _round_up(L, 8))), 8)
    T = -(-L // tl)
    Lp = T * tl

    # ---- pack weights: pad channels lane-dense, concat taps along lanes ----
    w1p = jnp.zeros((3, CinP, CoutP), jnp.float32).at[:, :Cin, :Cout].set(w1)
    w2p = jnp.zeros((3, CoutP, CoutP), jnp.float32).at[:, :Cout, :Cout].set(w2)
    wsp = jnp.zeros((CinP, CoutP), jnp.float32).at[:Cin, :Cout].set(ws)
    w1s = jnp.concatenate([w1p[0], w1p[1], w1p[2], wsp], 1).astype(jnp.bfloat16)
    w2c = jnp.concatenate([w2p[0], w2p[1], w2p[2]], 1).astype(jnp.bfloat16)
    pad_b = lambda b: jnp.zeros((1, CoutP), jnp.float32).at[:, :Cout].set(
        jnp.asarray(b, jnp.float32).reshape(1, -1))
    b1p, b2p, bsp = pad_b(b1), pad_b(b2), pad_b(bs)

    # ---- per-tile input windows with a 2-row halo on each side ----
    # (for very long L, generate these with conv_general_dilated_patches or a
    #  manual halo DMA instead of a Python stack)
    xpad = jnp.pad(x_nlc, ((0, 0), (2, Lp + 2 - L), (0, CinP - Cin)))
    xpad = xpad.astype(jnp.bfloat16)
    x_win = jnp.stack(
        [xpad[:, t * tl:t * tl + tl + 4, :] for t in range(T)], axis=1)

    kernel = functools.partial(_resblock_kernel, tl=tl, l_valid=L,
                               cout_p=CoutP)
    out = pl.pallas_call(
        kernel,
        out_shape=jax.ShapeDtypeStruct((N, Lp, CoutP), jnp.float32),
        grid_spec=pltpu.PrefetchScalarGridSpec(
            num_scalar_prefetch=0,
            grid=(N, T),
            in_specs=[
                pl.BlockSpec((1, 1, tl + 4, CinP), lambda n, t: (n, t, 0, 0)),
                pl.BlockSpec((CinP, 4 * CoutP), lambda n, t: (0, 0)),
                pl.BlockSpec((1, CoutP), lambda n, t: (0, 0)),
                pl.BlockSpec((CoutP, 3 * CoutP), lambda n, t: (0, 0)),
                pl.BlockSpec((1, CoutP), lambda n, t: (0, 0)),
                pl.BlockSpec((1, CoutP), lambda n, t: (0, 0)),
            ],
            out_specs=pl.BlockSpec((1, tl, CoutP), lambda n, t: (n, t, 0)),
        ),
        compiler_params=pltpu.CompilerParams(
            dimension_semantics=("parallel", "parallel"),
            vmem_limit_bytes=32 * 1024 * 1024),
    )(x_win, w1s, b1p, w2c, b2p, bsp)
    return out[:, :L, :Cout]


# ---------------- parameter setup / folding (plain JAX glue) ----------------

def fold_conv_bn(w_oik, b, gamma, beta, mean, var):
    """Fold eval-mode BN into conv.  w_oik: (Cout, Cin, K) PyTorch layout.
    Returns (K, Cin, Cout) weights and (1, Cout) bias."""
    s = gamma / jnp.sqrt(var + EPS)
    w_kio = jnp.transpose(w_oik, (2, 1, 0)) * s[None, None, :]
    b_f = s * (b - mean) + beta
    return w_kio.astype(jnp.float32), b_f.reshape(1, -1).astype(jnp.float32)


# ---------------- pure-JAX reference (mirrors the PyTorch forward) ----------

def reference_forward(x_ncl, p):
    def conv1d(x, w, b, pad):
        y = lax.conv_general_dilated(x, w, (1,), [(pad, pad)],
                                     dimension_numbers=("NCH", "OIH", "NCH"))
        return y + b[None, :, None]

    def bn(x, g, be, m, v):
        return ((x - m[None, :, None]) / jnp.sqrt(v[None, :, None] + EPS)
                * g[None, :, None] + be[None, :, None])

    out = jax.nn.relu(bn(conv1d(x_ncl, p["w1"], p["b1"], 1),
                         p["g1"], p["be1"], p["m1"], p["v1"]))
    out = bn(conv1d(out, p["w2"], p["b2"], 1),
             p["g2"], p["be2"], p["m2"], p["v2"])
    idn = bn(conv1d(x_ncl, p["ws"], p["bs"], 0),
             p["gs"], p["bes"], p["ms"], p["vs"])
    return jax.nn.relu(out + idn)


if __name__ == "__main__":
    # downsample=False, in != out channels -> conv1x1+BN shortcut branch.
    # L=200 with tl=64 exercises multi-tile halos and a partial last tile.
    N, Cin, Cout, L = 2, 8, 16, 200

    key = jax.random.PRNGKey(0)
    ks = jax.random.split(key, 20)

    def nrm(k, shape, scale=0.1):
        return scale * jax.random.normal(k, shape, jnp.float32)

    p = {
        # conv1 + bn1
        "w1": nrm(ks[0], (Cout, Cin, 3)), "b1": nrm(ks[1], (Cout,)),
        "g1": 1.0 + nrm(ks[2], (Cout,)), "be1": nrm(ks[3], (Cout,)),
        "m1": nrm(ks[4], (Cout,)), "v1": 0.5 + jnp.abs(nrm(ks[5], (Cout,))),
        # conv2 + bn2
        "w2": nrm(ks[6], (Cout, Cout, 3)), "b2": nrm(ks[7], (Cout,)),
        "g2": 1.0 + nrm(ks[8], (Cout,)), "be2": nrm(ks[9], (Cout,)),
        "m2": nrm(ks[10], (Cout,)), "v2": 0.5 + jnp.abs(nrm(ks[11], (Cout,))),
        # shortcut 1x1 conv + bn
        "ws": nrm(ks[12], (Cout, Cin, 1)), "bs": nrm(ks[13], (Cout,)),
        "gs": 1.0 + nrm(ks[14], (Cout,)), "bes": nrm(ks[15], (Cout,)),
        "ms": nrm(ks[16], (Cout,)), "vs": 0.5 + jnp.abs(nrm(ks[17], (Cout,))),
    }

    # fold BN into the convs for the kernel
    w1_f, b1_f = fold_conv_bn(p["w1"], p["b1"], p["g1"], p["be1"], p["m1"], p["v1"])
    w2_f, b2_f = fold_conv_bn(p["w2"], p["b2"], p["g2"], p["be2"], p["m2"], p["v2"])
    ws_f3, bs_f = fold_conv_bn(p["ws"], p["bs"], p["gs"], p["bes"], p["ms"], p["vs"])
    ws_f = ws_f3[0]                               # (Cin, Cout) 1x1 conv

    # input in PyTorch NCL layout, transposed to NLC for the kernel
    x_ncl = jax.random.normal(ks[18], (N, Cin, L), jnp.float32)
    x_nlc = jnp.transpose(x_ncl, (0, 2, 1))

    out_nlc = residual_block_pallas(x_nlc, w1_f, b1_f, w2_f, b2_f, ws_f, bs_f,
                                    tl=64)
    out_nlc = jax.block_until_ready(out_nlc)
    out_ncl = jnp.transpose(out_nlc, (0, 2, 1))

    ref_ncl = reference_forward(x_ncl, p)
    assert out_ncl.shape == (N, Cout, L)
    # bf16 MXU inputs (f32 accumulate) vs f32 reference -> loose tolerance.
    assert jnp.allclose(out_ncl, ref_ncl, rtol=3e-2, atol=3e-2), (
        float(jnp.max(jnp.abs(out_ncl - ref_ncl))))

    print("KERNEL_OK")
</pallas_src>

<mosaic_0001>
module attributes {stable_mosaic.version = 11 : i64} {
  func.func @_resblock_kernel(%arg0: i32, %arg1: i32, %arg2: memref<1x1x68x128xbf16, #tpu.memory_space<vmem>>, %arg3: memref<128x512xbf16, #tpu.memory_space<vmem>>, %arg4: memref<1x128xf32, #tpu.memory_space<vmem>>, %arg5: memref<128x384xbf16, #tpu.memory_space<vmem>>, %arg6: memref<1x128xf32, #tpu.memory_space<vmem>>, %arg7: memref<1x128xf32, #tpu.memory_space<vmem>>, %arg8: memref<1x64x128xf32, #tpu.memory_space<vmem>>) attributes {dimension_semantics = [#tpu.dimension_semantics<parallel>, #tpu.dimension_semantics<parallel>], iteration_bounds = array<i64: 2, 4>, scalar_prefetch = 0 : i64, scratch_operands = 0 : i64, tpu.core_type = #tpu.core_type<tc>, window_params = [{transform_indices = @transform_0, window_bounds = array<i64: 1, 1, 68, 128>}, {pipeline_mode = #tpu.pipeline_mode<synchronous>, transform_indices = @transform_1, window_bounds = array<i64: 128, 512>}, {pipeline_mode = #tpu.pipeline_mode<synchronous>, transform_indices = @transform_2, window_bounds = array<i64: 1, 128>}, {pipeline_mode = #tpu.pipeline_mode<synchronous>, transform_indices = @transform_3, window_bounds = array<i64: 128, 384>}, {pipeline_mode = #tpu.pipeline_mode<synchronous>, transform_indices = @transform_4, window_bounds = array<i64: 1, 128>}, {pipeline_mode = #tpu.pipeline_mode<synchronous>, transform_indices = @transform_5, window_bounds = array<i64: 1, 128>}, {transform_indices = @transform_6, window_bounds = array<i64: 1, 64, 128>}]} {
    %c0 = arith.constant 0 : index
    %c0_0 = arith.constant 0 : index
    %c0_1 = arith.constant 0 : index
    %c0_2 = arith.constant 0 : index
    %0 = vector.load %arg2[%c0, %c0_0, %c0_1, %c0_2] : memref<1x1x68x128xbf16, #tpu.memory_space<vmem>>, vector<1x1x68x128xbf16>
    %1 = vector.shape_cast %0 : vector<1x1x68x128xbf16> to vector<68x128xbf16>
    %c0_3 = arith.constant 0 : index
    %c0_4 = arith.constant 0 : index
    %2 = vector.load %arg3[%c0_3, %c0_4] : memref<128x512xbf16, #tpu.memory_space<vmem>>, vector<128x512xbf16>
    %cst = arith.constant dense<0.000000e+00> : vector<68x512xf32>
    %3 = tpu.matmul %1, %2, %cst {dimension_numbers = #tpu.dot_dimension_numbers<[1], [0], [0], [1], [0, 0, 1, 1], [], []>} : vector<68x128xbf16>, vector<128x512xbf16>, vector<68x512xf32> -> vector<68x512xf32>
    %4 = vector.extract_strided_slice %3 {offsets = [0, 0], sizes = [68, 128], strides = [1, 1]} : vector<68x512xf32> to vector<68x128xf32>
    %5 = vector.extract_strided_slice %3 {offsets = [0, 128], sizes = [68, 128], strides = [1, 1]} : vector<68x512xf32> to vector<68x128xf32>
    %6 = vector.extract_strided_slice %3 {offsets = [0, 256], sizes = [68, 128], strides = [1, 1]} : vector<68x512xf32> to vector<68x128xf32>
    %7 = vector.extract_strided_slice %3 {offsets = [0, 384], sizes = [68, 128], strides = [1, 1]} : vector<68x512xf32> to vector<68x128xf32>
    %8 = vector.extract_strided_slice %4 {offsets = [0, 0], sizes = [66, 128], strides = [1, 1]} : vector<68x128xf32> to vector<66x128xf32>
    %9 = vector.extract_strided_slice %5 {offsets = [1, 0], sizes = [66, 128], strides = [1, 1]} : vector<68x128xf32> to vector<66x128xf32>
    %10 = arith.addf %8, %9 : vector<66x128xf32>
    %11 = vector.extract_strided_slice %6 {offsets = [2, 0], sizes = [66, 128], strides = [1, 1]} : vector<68x128xf32> to vector<66x128xf32>
    %12 = arith.addf %10, %11 : vector<66x128xf32>
    %c0_5 = arith.constant 0 : index
    %c0_6 = arith.constant 0 : index
    %13 = vector.load %arg4[%c0_5, %c0_6] : memref<1x128xf32, #tpu.memory_space<vmem>>, vector<1x128xf32>
    %14 = vector.broadcast %13 : vector<1x128xf32> to vector<66x128xf32>
    %15 = arith.addf %12, %14 : vector<66x128xf32>
    %cst_7 = arith.constant 0.000000e+00 : f32
    %16 = vector.broadcast %cst_7 : f32 to vector<66x128xf32>
    %17 = arith.maximumf %15, %16 : vector<66x128xf32>
    %c64_i32 = arith.constant 64 : i32
    %18 = arith.muli %arg1, %c64_i32 : i32
    %19 = tpu.iota {dimensions = array<i32: 0>} : vector<66x128xi32>
    %20 = vector.broadcast %18 : i32 to vector<66x128xi32>
    %21 = arith.addi %20, %19 : vector<66x128xi32>
    %c1_i32 = arith.constant 1 : i32
    %22 = vector.broadcast %c1_i32 : i32 to vector<66x128xi32>
    %23 = arith.subi %21, %22 : vector<66x128xi32>
    %c0_i32 = arith.constant 0 : i32
    %24 = vector.broadcast %c0_i32 : i32 to vector<66x128xi32>
    %25 = arith.cmpi sge, %23, %24 : vector<66x128xi32>
    %c200_i32 = arith.constant 200 : i32
    %26 = vector.broadcast %c200_i32 : i32 to vector<66x128xi32>
    %27 = arith.cmpi slt, %23, %26 : vector<66x128xi32>
    %28 = arith.andi %25, %27 : vector<66x128xi1>
    %cst_8 = arith.constant 0.000000e+00 : f32
    %29 = vector.broadcast %cst_8 : f32 to vector<66x128xf32>
    %30 = arith.select %28, %17, %29 : vector<66x128xi1>, vector<66x128xf32>
    %31 = arith.truncf %30 : vector<66x128xf32> to vector<66x128xbf16>
    %c0_9 = arith.constant 0 : index
    %c0_10 = arith.constant 0 : index
    %32 = vector.load %arg5[%c0_9, %c0_10] : memref<128x384xbf16, #tpu.memory_space<vmem>>, vector<128x384xbf16>
    %cst_11 = arith.constant dense<0.000000e+00> : vector<66x384xf32>
    %33 = tpu.matmul %31, %32, %cst_11 {dimension_numbers = #tpu.dot_dimension_numbers<[1], [0], [0], [1], [0, 0, 1, 1], [], []>} : vector<66x128xbf16>, vector<128x384xbf16>, vector<66x384xf32> -> vector<66x384xf32>
    %34 = vector.extract_strided_slice %33 {offsets = [0, 0], sizes = [66, 128], strides = [1, 1]} : vector<66x384xf32> to vector<66x128xf32>
    %35 = vector.extract_strided_slice %33 {offsets = [0, 128], sizes = [66, 128], strides = [1, 1]} : vector<66x384xf32> to vector<66x128xf32>
    %36 = vector.extract_strided_slice %33 {offsets = [0, 256], sizes = [66, 128], strides = [1, 1]} : vector<66x384xf32> to vector<66x128xf32>
    %37 = vector.extract_strided_slice %34 {offsets = [0, 0], sizes = [64, 128], strides = [1, 1]} : vector<66x128xf32> to vector<64x128xf32>
    %38 = vector.extract_strided_slice %35 {offsets = [1, 0], sizes = [64, 128], strides = [1, 1]} : vector<66x128xf32> to vector<64x128xf32>
    %39 = arith.addf %37, %38 : vector<64x128xf32>
    %40 = vector.extract_strided_slice %36 {offsets = [2, 0], sizes = [64, 128], strides = [1, 1]} : vector<66x128xf32> to vector<64x128xf32>
    %41 = arith.addf %39, %40 : vector<64x128xf32>
    %c0_12 = arith.constant 0 : index
    %c0_13 = arith.constant 0 : index
    %42 = vector.load %arg6[%c0_12, %c0_13] : memref<1x128xf32, #tpu.memory_space<vmem>>, vector<1x128xf32>
    %43 = vector.broadcast %42 : vector<1x128xf32> to vector<64x128xf32>
    %44 = arith.addf %41, %43 : vector<64x128xf32>
    %45 = vector.extract_strided_slice %7 {offsets = [2, 0], sizes = [64, 128], strides = [1, 1]} : vector<68x128xf32> to vector<64x128xf32>
    %c0_14 = arith.constant 0 : index
    %c0_15 = arith.constant 0 : index
    %46 = vector.load %arg7[%c0_14, %c0_15] : memref<1x128xf32, #tpu.memory_space<vmem>>, vector<1x128xf32>
    %47 = vector.broadcast %46 : vector<1x128xf32> to vector<64x128xf32>
    %48 = arith.addf %45, %47 : vector<64x128xf32>
    %49 = arith.addf %44, %48 : vector<64x128xf32>
    %cst_16 = arith.constant 0.000000e+00 : f32
    %50 = vector.broadcast %cst_16 : f32 to vector<64x128xf32>
    %51 = arith.maximumf %49, %50 : vector<64x128xf32>
    %c0_17 = arith.constant 0 : index
    %c0_18 = arith.constant 0 : index
    %c0_19 = arith.constant 0 : index
    %52 = vector.load %arg8[%c0_17, %c0_18, %c0_19] : memref<1x64x128xf32, #tpu.memory_space<vmem>>, vector<1x64x128xf32>
    %53 = vector.shape_cast %52 : vector<1x64x128xf32> to vector<64x128xf32>
    %54 = vector.shape_cast %51 : vector<64x128xf32> to vector<1x64x128xf32>
    tpu.vector_store %arg8[%c0_17, %c0_18, %c0_19], %54 {strides = array<i32>} : memref<1x64x128xf32, #tpu.memory_space<vmem>>, vector<1x64x128xf32>,
    return
  }
  func.func @transform_0(%arg0: i32, %arg1: i32) -> (i32, i32, i32, i32) {
    %c0_i32 = arith.constant 0 : i32
    %c0_i32_0 = arith.constant 0 : i32
    %c0_i32_1 = arith.constant 0 : i32
    return %arg0, %arg1, %c0_i32, %c0_i32_0 : i32, i32, i32, i32
  }
  func.func @transform_1(%arg0: i32, %arg1: i32) -> (i32, i32) {
    %c0_i32 = arith.constant 0 : i32
    %c0_i32_0 = arith.constant 0 : i32
    %c0_i32_1 = arith.constant 0 : i32
    return %c0_i32, %c0_i32_0 : i32, i32
  }
  func.func @transform_2(%arg0: i32, %arg1: i32) -> (i32, i32) {
    %c0_i32 = arith.constant 0 : i32
    %c0_i32_0 = arith.constant 0 : i32
    %c0_i32_1 = arith.constant 0 : i32
    return %c0_i32, %c0_i32_0 : i32, i32
  }
  func.func @transform_3(%arg0: i32, %arg1: i32) -> (i32, i32) {
    %c0_i32 = arith.constant 0 : i32
    %c0_i32_0 = arith.constant 0 : i32
    %c0_i32_1 = arith.constant 0 : i32
    return %c0_i32, %c0_i32_0 : i32, i32
  }
  func.func @transform_4(%arg0: i32, %arg1: i32) -> (i32, i32) {
    %c0_i32 = arith.constant 0 : i32
    %c0_i32_0 = arith.constant 0 : i32
    %c0_i32_1 = arith.constant 0 : i32
    return %c0_i32, %c0_i32_0 : i32, i32
  }
  func.func @transform_5(%arg0: i32, %arg1: i32) -> (i32, i32) {
    %c0_i32 = arith.constant 0 : i32
    %c0_i32_0 = arith.constant 0 : i32
    %c0_i32_1 = arith.constant 0 : i32
    return %c0_i32, %c0_i32_0 : i32, i32
  }
  func.func @transform_6(%arg0: i32, %arg1: i32) -> (i32, i32, i32) {
    %c0_i32 = arith.constant 0 : i32
    %c0_i32_0 = arith.constant 0 : i32
    return %arg0, %arg1, %c0_i32 : i32, i32, i32
  }
}

</mosaic_0001>

<llo_original>
// kernel: tpu_custom_call.1
$region0: #{tpu_custom_call.1}
  #allocation0 [shape = 'u32[]', space=smem, size = 0x4, offset = 0x4, fixed_abs, tag = 'smem constant byte address 0x4 - core index']
  #allocation1 [shape = 'u32[144,128]{1,0:T(1,128)}', space=vmem, size = 0x12000, scoped, tag = 'internal scratch']
  %s0 = inlined_call_operand.vmem [shape: bf16[2,4,68,128], index: 0, kind: input, shape index: {}]
  %s1 = inlined_call_operand.vmem [shape: bf16[128,512], index: 1, kind: input, shape index: {}]
  %s2 = inlined_call_operand.vmem [shape: f32[1,128], index: 2, kind: input, shape index: {}]
  %s3 = inlined_call_operand.vmem [shape: bf16[128,384], index: 3, kind: input, shape index: {}]
  %s4 = inlined_call_operand.vmem [shape: f32[1,128], index: 4, kind: input, shape index: {}]
  %s5 = inlined_call_operand.vmem [shape: f32[1,128], index: 5, kind: input, shape index: {}]
  %s6 = inlined_call_operand.hbm [shape: f32[2,256,128], index: 6, kind: output, shape index: {}]
  %s7 = sld [smem:[#allocation0]]
  $region57: #{tpu_custom_call.1} parent=0
    _
  %s9 = ssub.s32 1, %s7
  %s10 = scalar_select 0, %s9, %s7
  $region1: #{tpu_custom_call.1} parent=0
    #allocation2 [shape = 'u8[65536]{0}', space=vmem, size = 0x10000, scoped, tag = 'output window, operand 0']
    #allocation3 [shape = 's32[2]{0}', space=sflag, size = 0x8, scoped, tag = 'scoped memory for tpu_custom_call.1']
    %11 = vsyncpa [#allocation3], 0
    %s12 = scalar_lea.sflag [#allocation3], 1
    %13 = vsyncpa %s12, 0
    loop: start=0, step=1, limit=10
    $region2: #{tpu_custom_call.1} parent=1 // loop_pre_header
      _
    $region3: #{tpu_custom_call.1} parent=1 // loop_header
      %s15 = sphi 0, %s19
      %p16 = scmp.ge.s32.totalorder %s15, 10
      %s22 = sphi 0, %s34
      %s23 = sphi 0, %s30
      %s24 = sphi 0, %s22
      %s25 = sphi 0, %s23
      %s26 = sphi 0, %s24
      %s27 = sphi 0, %s25
      %s39 = sphi 0, %s41
      %s42 = sphi 0, %s39
      %s43 = sphi 0, %s42
      %s59 = sphi 0, %s43
      %s63 = sphi 0, %s63
      %s65 = sphi 0, %s63
      %s66 = sphi 0, %s65
      %s80 = sphi 0, %s66
      %s84 = sphi 0, %s84
      %s86 = sphi 0, %s84
      %s87 = sphi 0, %s86
      %s101 = sphi 0, %s87
      %s105 = sphi 0, %s105
      %s107 = sphi 0, %s105
      %s108 = sphi 0, %s107
      %s122 = sphi 0, %s108
      %s126 = sphi 0, %s126
      %s128 = sphi 0, %s126
      %s129 = sphi 0, %s128
      %s143 = sphi 0, %s129
      %s147 = sphi 0, %s147
      %s149 = sphi 0, %s147
      %s150 = sphi 0, %s149
      %s164 = sphi 0, %s150
      %s172 = sphi 0, %s174
      %s175 = sphi 0, %s172
      %s176 = sphi 0, %s175
      %s192 = sphi 0, %s176
    $region4: #{tpu_custom_call.1} parent=1 // loop_header_branch
      %18 = sbr.rel (%p16) target = $region8
    $region5: #{tpu_custom_call.1} parent=1 // loop_body
      %s20 = ssub.s32 %s15, 1
      %s21 = ssub.s32 %s15, 2
      %s28 = sadd.s32 1, %s23
      %p29 = scmp.ge.s32.totalorder %s28, 4
      %s30 = scalar_select %p29, 0, %s28
      %s31 = sadd.s32 1, %s22
      %s32 = scalar_select %p29, %s31, %s22
      %p33 = scmp.ge.s32.totalorder %s32, 2
      %s34 = scalar_select %p33, 0, %s32
      %s35 = ssub.s32 %s22, %s34
      %s36 = ssub.s32 %s23, %s30
      %s37 = sor.u32 %s35, %s36
      %p38 = scmp.eq.s32.totalorder %s37, 0
      %s40 = sadd.s32 %s39, 1
      %s41 = scalar_select %p38, %s39, %s40
      %p44 = pneg %p38
      %p45 = scmp.eq.s32.totalorder %s15, 7
      %p46 = por %p44, %p45
      %p47 = scmp.ne.s32.totalorder %s39, %s42
      %p48 = scmp.eq.s32.totalorder %s15, 0
      %p49 = por %p47, %p48
      %p50 = scmp.ne.s32.totalorder %s39, %s42
      %p51 = scmp.eq.s32.totalorder %s20, 7
      %p52 = por %p50, %p51
      %p53 = scmp.ne.s32.totalorder %s42, %s43
      %p54 = scmp.eq.s32.totalorder %s20, 0
      %p55 = por %p53, %p54
      %p56 = scmp.ne.s32.totalorder %s42, %s43
      %p57 = scmp.eq.s32.totalorder %s21, 7
      %p58 = por %p56, %p57
      %p60 = scmp.ne.s32.totalorder %s43, %s59
      %p61 = scmp.eq.s32.totalorder %s21, 0
      %p62 = por %p60, %p61
      %s64 = sadd.s32 %s63, 1
      %p67 = scmp.eq.s32.totalorder %s15, 7
      %p68 = scmp.ne.s32.totalorder %s63, %s65
      %p69 = scmp.eq.s32.totalorder %s15, 0
      %p70 = por %p68, %p69
      %p71 = scmp.ne.s32.totalorder %s63, %s65
      %p72 = scmp.eq.s32.totalorder %s20, 7
      %p73 = por %p71, %p72
      %p74 = scmp.ne.s32.totalorder %s65, %s66
      %p75 = scmp.eq.s32.totalorder %s20, 0
      %p76 = por %p74, %p75
      %p77 = scmp.ne.s32.totalorder %s65, %s66
      %p78 = scmp.eq.s32.totalorder %s21, 7
      %p79 = por %p77, %p78
      %p81 = scmp.ne.s32.totalorder %s66, %s80
      %p82 = scmp.eq.s32.totalorder %s21, 0
      %p83 = por %p81, %p82
      %s85 = sadd.s32 %s84, 1
      %p88 = scmp.eq.s32.totalorder %s15, 7
      %p89 = scmp.ne.s32.totalorder %s84, %s86
      %p90 = scmp.eq.s32.totalorder %s15, 0
      %p91 = por %p89, %p90
      %p92 = scmp.ne.s32.totalorder %s84, %s86
      %p93 = scmp.eq.s32.totalorder %s20, 7
      %p94 = por %p92, %p93
      %p95 = scmp.ne.s32.totalorder %s86, %s87
      %p96 = scmp.eq.s32.totalorder %s20, 0
      %p97 = por %p95, %p96
      %p98 = scmp.ne.s32.totalorder %s86, %s87
      %p99 = scmp.eq.s32.totalorder %s21, 7
      %p100 = por %p98, %p99
      %p102 = scmp.ne.s32.totalorder %s87, %s101
      %p103 = scmp.eq.s32.totalorder %s21, 0
      %p104 = por %p102, %p103
      %s106 = sadd.s32 %s105, 1
      %p109 = scmp.eq.s32.totalorder %s15, 7
      %p110 = scmp.ne.s32.totalorder %s105, %s107
      %p111 = scmp.eq.s32.totalorder %s15, 0
      %p112 = por %p110, %p111
      %p113 = scmp.ne.s32.totalorder %s105, %s107
      %p114 = scmp.eq.s32.totalorder %s20, 7
      %p115 = por %p113, %p114
      %p116 = scmp.ne.s32.totalorder %s107, %s108
      %p117 = scmp.eq.s32.totalorder %s20, 0
      %p118 = por %p116, %p117
      %p119 = scmp.ne.s32.totalorder %s107, %s108
      %p120 = scmp.eq.s32.totalorder %s21, 7
      %p121 = por %p119, %p120
      %p123 = scmp.ne.s32.totalorder %s108, %s122
      %p124 = scmp.eq.s32.totalorder %s21, 0
      %p125 = por %p123, %p124
      %s127 = sadd.s32 %s126, 1
      %p130 = scmp.eq.s32.totalorder %s15, 7
      %p131 = scmp.ne.s32.totalorder %s126, %s128
      %p132 = scmp.eq.s32.totalorder %s15, 0
      %p133 = por %p131, %p132
      %p134 = scmp.ne.s32.totalorder %s126, %s128
      %p135 = scmp.eq.s32.totalorder %s20, 7
      %p136 = por %p134, %p135
      %p137 = scmp.ne.s32.totalorder %s128, %s129
      %p138 = scmp.eq.s32.totalorder %s20, 0
      %p139 = por %p137, %p138
      %p140 = scmp.ne.s32.totalorder %s128, %s129
      %p141 = scmp.eq.s32.totalorder %s21, 7
      %p142 = por %p140, %p141
      %p144 = scmp.ne.s32.totalorder %s129, %s143
      %p145 = scmp.eq.s32.totalorder %s21, 0
      %p146 = por %p144, %p145
      %s148 = sadd.s32 %s147, 1
      %p151 = scmp.eq.s32.totalorder %s15, 7
      %p152 = scmp.ne.s32.totalorder %s147, %s149
      %p153 = scmp.eq.s32.totalorder %s15, 0
      %p154 = por %p152, %p153
      %p155 = scmp.ne.s32.totalorder %s147, %s149
      %p156 = scmp.eq.s32.totalorder %s20, 7
      %p157 = por %p155, %p156
      %p158 = scmp.ne.s32.totalorder %s149, %s150
      %p159 = scmp.eq.s32.totalorder %s20, 0
      %p160 = por %p158, %p159
      %p161 = scmp.ne.s32.totalorder %s149, %s150
      %p162 = scmp.eq.s32.totalorder %s21, 7
      %p163 = por %p161, %p162
      %p165 = scmp.ne.s32.totalorder %s150, %s164
      %p166 = scmp.eq.s32.totalorder %s21, 0
      %p167 = por %p165, %p166
      %s168 = ssub.s32 %s22, %s34
      %s169 = ssub.s32 %s23, %s30
      %s170 = sor.u32 %s168, %s169
      %p171 = scmp.eq.s32.totalorder %s170, 0
      %s173 = sadd.s32 %s172, 1
      %s174 = scalar_select %p171, %s172, %s173
      %p177 = pneg %p171
      %p178 = scmp.eq.s32.totalorder %s15, 7
      %p179 = por %p177, %p178
      %p180 = scmp.ne.s32.totalorder %s172, %s175
      %p181 = scmp.eq.s32.totalorder %s15, 0
      %p182 = por %p180, %p181
      %p183 = scmp.ne.s32.totalorder %s172, %s175
      %p184 = scmp.eq.s32.totalorder %s20, 7
      %p185 = por %p183, %p184
      %p186 = scmp.ne.s32.totalorder %s175, %s176
      %p187 = scmp.eq.s32.totalorder %s20, 0
      %p188 = por %p186, %p187
      %p189 = scmp.ne.s32.totalorder %s175, %s176
      %p190 = scmp.eq.s32.totalorder %s21, 7
      %p191 = por %p189, %p190
      %p193 = scmp.ne.s32.totalorder %s176, %s192
      %p194 = scmp.eq.s32.totalorder %s21, 0
      %p195 = por %p193, %p194
      %p196 = scmp.le.s32.totalorder 1, %s15
      %p197 = scmp.lt.s32.totalorder %s15, 9
      %p198 = pnand %p196, %p197
      %p199 = pneg %p198
      // Predicated region
      $region9: #{tpu_custom_call.1} parent=5 // pred_check
        _
      $region10: #{tpu_custom_call.1} parent=5 // pred_check_branch
        %201 = sbr.rel (%p198) target = $region12
      $region11: #{tpu_custom_call.1} parent=5 // pred_region
        %s202 = ssub.s32 %s15, 1
        // Predicated region
        $region13: #{tpu_custom_call.1} parent=11 // pred_check
          %p203 = pneg %p76
        $region14: #{tpu_custom_call.1} parent=11 // pred_check_branch
          %205 = sbr.rel (%p203) target = $region16
        $region15: #{tpu_custom_call.1} parent=11 // pred_region
          _
        $region16: #{tpu_custom_call.1} parent=11 // pred_fallthru
          _
        // Predicated region
        $region17: #{tpu_custom_call.1} parent=11 // pred_check
          %p206 = pneg %p97
        $region18: #{tpu_custom_call.1} parent=11 // pred_check_branch
          %208 = sbr.rel (%p206) target = $region20
        $region19: #{tpu_custom_call.1} parent=11 // pred_region
          _
        $region20: #{tpu_custom_call.1} parent=11 // pred_fallthru
          _
        // Predicated region
        $region21: #{tpu_custom_call.1} parent=11 // pred_check
          %p209 = pneg %p118
        $region22: #{tpu_custom_call.1} parent=11 // pred_check_branch
          %211 = sbr.rel (%p209) target = $region24
        $region23: #{tpu_custom_call.1} parent=11 // pred_region
          _
        $region24: #{tpu_custom_call.1} parent=11 // pred_fallthru
          _
        // Predicated region
        $region25: #{tpu_custom_call.1} parent=11 // pred_check
          %p212 = pneg %p139
        $region26: #{tpu_custom_call.1} parent=11 // pred_check_branch
          %214 = sbr.rel (%p212) target = $region28
        $region27: #{tpu_custom_call.1} parent=11 // pred_region
          _
        $region28: #{tpu_custom_call.1} parent=11 // pred_fallthru
          _
        // Predicated region
        $region29: #{tpu_custom_call.1} parent=11 // pred_check
          %p215 = pneg %p160
        $region30: #{tpu_custom_call.1} parent=11 // pred_check_branch
          %217 = sbr.rel (%p215) target = $region32
        $region31: #{tpu_custom_call.1} parent=11 // pred_region
          _
        $region32: #{tpu_custom_call.1} parent=11 // pred_fallthru
          _
      $region12: #{tpu_custom_call.1} parent=5 // pred_fallthru
        _
      %p218 = scmp.lt.s32.totalorder %s15, 8
      // Predicated region
      $region33: #{tpu_custom_call.1} parent=5 // pred_check
        %p219 = pneg %p218
      $region34: #{tpu_custom_call.1} parent=5 // pred_check_branch
        %221 = sbr.rel (%p219) target = $region36
      $region35: #{tpu_custom_call.1} parent=5 // pred_region
        // Predicated region
        $region37: #{tpu_custom_call.1} parent=35 // pred_check
          %p222 = pneg %p49
        $region38: #{tpu_custom_call.1} parent=35 // pred_check_branch
          %224 = sbr.rel (%p222) target = $region40
        $region39: #{tpu_custom_call.1} parent=35 // pred_region
          %p225 = scmp.lt.s32.totalorder %s22, 1
          %s226 = scalar_select %p225, %s22, 1
          %p227 = scmp.lt.s32.totalorder %s23, 3
          %s228 = scalar_select %p227, %s23, 3
          %s229 = smul.addr %s228, 9
          %s230 = smul.addr %s226, 36
          %s231 = sadd.s32 %s229, %s230
          %s232 = smul.addr %s231, 4
          %s233 = scalar_lea.vmem %s0, %s232
        $region40: #{tpu_custom_call.1} parent=35 // pred_fallthru
          _
      $region36: #{tpu_custom_call.1} parent=5 // pred_fallthru
        _
      %p234 = scmp.le.s32.totalorder 1, %s15
      %p235 = scmp.lt.s32.totalorder %s15, 9
      %p236 = pnand %p234, %p235
      %p237 = pneg %p236
      // Predicated region
      $region41: #{tpu_custom_call.1} parent=5 // pred_check
        _
      $region42: #{tpu_custom_call.1} parent=5 // pred_check_branch
        %239 = sbr.rel (%p236) target = $region44
      $region43: #{tpu_custom_call.1} parent=5 // pred_region
        %s240 = ssub.s32 %s15, 1
        %p241 = scmp.lt.s32.totalorder %s24, 1
        %s242 = scalar_select %p241, %s24, 1
        %p243 = scmp.lt.s32.totalorder %s25, 3
        %s244 = scalar_select %p243, %s25, 3
        %s245 = smul.addr %s244, 9
        %s246 = smul.addr %s242, 36
        %s247 = sadd.s32 %s245, %s246
        %s248 = smul.addr %s247, 4
        %s249 = scalar_lea.vmem %s0, %s248
        %p250 = pneg %p55
        %p251 = pneg %p52
        %p252 = pneg %p76
        %p253 = pneg %p73
        %p254 = pneg %p97
        %p255 = pneg %p94
        %p256 = pneg %p118
        %p257 = pneg %p115
        %p258 = pneg %p139
        %p259 = pneg %p136
        %p260 = pneg %p160
        %p261 = pneg %p157
        %p262 = pneg %p188
        %p263 = pneg %p185
        %s264 = sand.u32 %s175, 1
        %s265 = scalar_lea.sflag [#allocation3], %s264
        %s266 = sand.u32 %s175, 1
        %s267 = smul.addr %s266, 64
        %s268 = scalar_lea.vmem [#allocation2], %s267
        %p269 = scmp.lt.s32.totalorder %s24, 1
        %s270 = scalar_select %p269, %s24, 1
        %p271 = scmp.lt.s32.totalorder %s25, 3
        %s272 = scalar_select %p271, %s25, 3
        %s273 = smul.addr %s272, 9
        %s274 = smul.addr %s270, 36
        %s275 = sadd.s32 %s273, %s274
        %s276 = smul.addr %s275, 4
        %s277 = scalar_lea.vmem %s0, %s276
        %s278 = smul.u32 8, %s25
        %v280 = vld [vmem:[%s277] sm:$0xf]
        %v281 = vld [vmem:[%s277 + $0x4] sm:$0xf]
        %v282 = vld [vmem:[%s277 + $0x8] sm:$0xf]
        %v283 = vld [vmem:[%s277 + $0xc] sm:$0xf]
        %v284 = vld [vmem:[%s277 + $0x10] sm:$0xf]
        %v285 = vld [vmem:[%s277 + $0x14] sm:$0xf]
        %v286 = vld [vmem:[%s277 + $0x18] sm:$0xf]
        %v287 = vld [vmem:[%s277 + $0x1c] sm:$0xf]
        %v288 = vld [vmem:[%s277 + $0x20] sm:$0x3]
        %v289 = vld [vmem:[%s1] sm:$0xff]
        %v290 = vld [vmem:[%s1 + $0x8] sm:$0xff]
        %v291 = vld [vmem:[%s1 + $0x10] sm:$0xff]
        %v292 = vld [vmem:[%s1 + $0x18] sm:$0xff]
        %v293 = vld [vmem:[%s1 + $0x20] sm:$0xff]
        %v294 = vld [vmem:[%s1 + $0x28] sm:$0xff]
        %v295 = vld [vmem:[%s1 + $0x30] sm:$0xff]
        %v296 = vld [vmem:[%s1 + $0x38] sm:$0xff]
        %v297 = vld [vmem:[%s1 + $0x40] sm:$0xff]
        %v298 = vld [vmem:[%s1 + $0x48] sm:$0xff]
        %v299 = vld [vmem:[%s1 + $0x50] sm:$0xff]
        %v300 = vld [vmem:[%s1 + $0x58] sm:$0xff]
        %v301 = vld [vmem:[%s1 + $0x60] sm:$0xff]
        %v302 = vld [vmem:[%s1 + $0x68] sm:$0xff]
        %v303 = vld [vmem:[%s1 + $0x70] sm:$0xff]
        %v304 = vld [vmem:[%s1 + $0x78] sm:$0xff]
        %v305 = vld [vmem:[%s1 + $0x80] sm:$0xff]
        %v306 = vld [vmem:[%s1 + $0x88] sm:$0xff]
        %v307 = vld [vmem:[%s1 + $0x90] sm:$0xff]
        %v308 = vld [vmem:[%s1 + $0x98] sm:$0xff]
        %v309 = vld [vmem:[%s1 + $0xa0] sm:$0xff]
        %v310 = vld [vmem:[%s1 + $0xa8] sm:$0xff]
        %v311 = vld [vmem:[%s1 + $0xb0] sm:$0xff]
        %v312 = vld [vmem:[%s1 + $0xb8] sm:$0xff]
        %v313 = vld [vmem:[%s1 + $0xc0] sm:$0xff]
        %v314 = vld [vmem:[%s1 + $0xc8] sm:$0xff]
        %v315 = vld [vmem:[%s1 + $0xd0] sm:$0xff]
        %v316 = vld [vmem:[%s1 + $0xd8] sm:$0xff]
        %v317 = vld [vmem:[%s1 + $0xe0] sm:$0xff]
        %v318 = vld [vmem:[%s1 + $0xe8] sm:$0xff]
        %v319 = vld [vmem:[%s1 + $0xf0] sm:$0xff]
        %v320 = vld [vmem:[%s1 + $0xf8] sm:$0xff]
        %v330 = vunpack.c.l.b16 %v280
        %v331 = vunpack.c.l.b16 %v281
        %v332 = vunpack.c.l.b16 %v282
        %v333 = vunpack.c.l.b16 %v283
        %v334 = vunpack.c.l.b16 %v284
        %v335 = vunpack.c.l.b16 %v285
        %v336 = vunpack.c.l.b16 %v286
        %v337 = vunpack.c.l.b16 %v287
        %v338 = vunpack.c.l.b16 %v288
        %v339 = vpack.c.b16 %v331, %v330
        %v340 = vpack.c.b16 %v333, %v332
        %v341 = vpack.c.b16 %v335, %v334
        %v342 = vpack.c.b16 %v337, %v336
        %v343 = vpack.c.b16 %v338, %v338
        %v381 = vunpack.c.l.b16 %v289
        %v382 = vunpack.c.h.b16 %v289
        %v383 = vunpack.c.l.b16 %v290
        %v384 = vunpack.c.h.b16 %v290
        %v385 = vunpack.c.l.b16 %v291
        %v386 = vunpack.c.h.b16 %v291
        %v387 = vunpack.c.l.b16 %v292
        %v388 = vunpack.c.h.b16 %v292
        %v389 = vunpack.c.l.b16 %v293
        %v390 = vunpack.c.h.b16 %v293
        %v391 = vunpack.c.l.b16 %v294
        %v392 = vunpack.c.h.b16 %v294
        %v393 = vunpack.c.l.b16 %v295
        %v394 = vunpack.c.h.b16 %v295
        %v395 = vunpack.c.l.b16 %v296
        %v396 = vunpack.c.h.b16 %v296
        %v397 = vunpack.c.l.b16 %v297
        %v398 = vunpack.c.h.b16 %v297
        %v399 = vunpack.c.l.b16 %v298
        %v400 = vunpack.c.h.b16 %v298
        %v401 = vunpack.c.l.b16 %v299
        %v402 = vunpack.c.h.b16 %v299
        %v403 = vunpack.c.l.b16 %v300
        %v404 = vunpack.c.h.b16 %v300
        %v405 = vunpack.c.l.b16 %v301
        %v406 = vunpack.c.h.b16 %v301
        %v407 = vunpack.c.l.b16 %v302
        %v408 = vunpack.c.h.b16 %v302
        %v409 = vunpack.c.l.b16 %v303
        %v410 = vunpack.c.h.b16 %v303
        %v411 = vunpack.c.l.b16 %v304
        %v412 = vunpack.c.h.b16 %v304
        %v413 = vunpack.c.l.b16 %v305
        %v414 = vunpack.c.h.b16 %v305
        %v415 = vunpack.c.l.b16 %v306
        %v416 = vunpack.c.h.b16 %v306
        %v417 = vunpack.c.l.b16 %v307
        %v418 = vunpack.c.h.b16 %v307
        %v419 = vunpack.c.l.b16 %v308
        %v420 = vunpack.c.h.b16 %v308
        %v421 = vunpack.c.l.b16 %v309
        %v422 = vunpack.c.h.b16 %v309
        %v423 = vunpack.c.l.b16 %v310
        %v424 = vunpack.c.h.b16 %v310
        %v425 = vunpack.c.l.b16 %v311
        %v426 = vunpack.c.h.b16 %v311
        %v427 = vunpack.c.l.b16 %v312
        %v428 = vunpack.c.h.b16 %v312
        %v429 = vunpack.c.l.b16 %v313
        %v430 = vunpack.c.h.b16 %v313
        %v431 = vunpack.c.l.b16 %v314
        %v432 = vunpack.c.h.b16 %v314
        %v433 = vunpack.c.l.b16 %v315
        %v434 = vunpack.c.h.b16 %v315
        %v435 = vunpack.c.l.b16 %v316
        %v436 = vunpack.c.h.b16 %v316
        %v437 = vunpack.c.l.b16 %v317
        %v438 = vunpack.c.h.b16 %v317
        %v439 = vunpack.c.l.b16 %v318
        %v440 = vunpack.c.h.b16 %v318
        %v441 = vunpack.c.l.b16 %v319
        %v442 = vunpack.c.h.b16 %v319
        %v443 = vunpack.c.l.b16 %v320
        %v444 = vunpack.c.h.b16 %v320
        %v445 = vpack.c.b16 %v385, %v381
        %v446 = vpack.c.b16 %v386, %v382
        %v447 = vpack.c.b16 %v387, %v383
        %v448 = vpack.c.b16 %v388, %v384
        %v449 = vpack.c.b16 %v393, %v389
        %v450 = vpack.c.b16 %v394, %v390
        %v451 = vpack.c.b16 %v395, %v391
        %v452 = vpack.c.b16 %v396, %v392
        %v453 = vpack.c.b16 %v401, %v397
        %v454 = vpack.c.b16 %v402, %v398
        %v455 = vpack.c.b16 %v403, %v399
        %v456 = vpack.c.b16 %v404, %v400
        %v457 = vpack.c.b16 %v409, %v405
        %v458 = vpack.c.b16 %v410, %v406
        %v459 = vpack.c.b16 %v411, %v407
        %v460 = vpack.c.b16 %v412, %v408
        %v461 = vpack.c.b16 %v417, %v413
        %v462 = vpack.c.b16 %v418, %v414
        %v463 = vpack.c.b16 %v419, %v415
        %v464 = vpack.c.b16 %v420, %v416
        %v465 = vpack.c.b16 %v425, %v421
        %v466 = vpack.c.b16 %v426, %v422
        %v467 = vpack.c.b16 %v427, %v423
        %v468 = vpack.c.b16 %v428, %v424
        %v469 = vpack.c.b16 %v433, %v429
        %v470 = vpack.c.b16 %v434, %v430
        %v471 = vpack.c.b16 %v435, %v431
        %v472 = vpack.c.b16 %v436, %v432
        %v473 = vpack.c.b16 %v441, %v437
        %v474 = vpack.c.b16 %v442, %v438
        %v475 = vpack.c.b16 %v443, %v439
        %v476 = vpack.c.b16 %v444, %v440
        %509 = vmatprep.subr.bf16.mxu0 %v474
        %510 = vmatpush1.bf16.msra.mxu0 %v473
        %511 = vmatprep.subr.bf16.mxu0 %v470
        %512 = vmatpush1.bf16.msra.mxu0 %v469
        %513 = vmatprep.subr.bf16.mxu0 %v466
        %514 = vmatpush1.bf16.msra.mxu0 %v465
        %515 = vmatprep.subr.bf16.mxu0 %v462
        %516 = vmatpush1.bf16.msra.mxu0 %v461
        %517 = vmatprep.subr.bf16.mxu0 %v458
        %518 = vmatpush1.bf16.msra.mxu0 %v457
        %519 = vmatprep.subr.bf16.mxu0 %v454
        %520 = vmatpush1.bf16.msra.mxu0 %v453
        %521 = vmatprep.subr.bf16.mxu0 %v450
        %522 = vmatpush1.bf16.msra.mxu0 %v449
        %523 = vmatprep.subr.bf16.mxu0 %v446
        %524 = vmatpush1.bf16.msra.mxu0 %v445
        %525 = vmatprep.subr.bf16.mxu0 0
        %526 = vmatpush2.bf16.msra.mxu0 0
        %527 = vmatprep.subr.bf16.mxu0 0
        %528 = vmatpush2.bf16.msra.mxu0 0
        %529 = vmatprep.subr.bf16.mxu0 0
        %530 = vmatpush2.bf16.msra.mxu0 0
        %531 = vmatprep.subr.bf16.mxu0 0
        %532 = vmatpush2.bf16.msra.mxu0 0
        %533 = vmatprep.subr.bf16.mxu0 0
        %534 = vmatpush2.bf16.msra.mxu0 0
        %535 = vmatprep.subr.bf16.mxu0 0
        %536 = vmatpush2.bf16.msra.mxu0 0
        %537 = vmatprep.subr.bf16.mxu0 0
        %538 = vmatpush2.bf16.msra.mxu0 0
        %539 = vmatprep.subr.bf16.mxu0 0
        %540 = vmatpush2.bf16.msra.mxu0 0
        %541 = vmatprep.mubr.bf16.mxu0 0
        %542 = vmatmul.mubr.bf16.gmra.mxu0 %v339
        %v543 = vpop.f32.mrf.mxu0
        %v544 = vadd.f32 0.0, %v543
        %v545 = vpop.f32.mrf.mxu0
        %v546 = vadd.f32 0.0, %v545
        %v547 = vpop.f32.mrf.mxu0
        %v548 = vadd.f32 0.0, %v547
        %v549 = vpop.f32.mrf.mxu0
        %v550 = vadd.f32 0.0, %v549
        %551 = vmatprep.mubr.bf16.mxu0 0
        %552 = vmatmul.mubr.bf16.gmra.mxu0 %v340
        %v553 = vpop.f32.mrf.mxu0
        %v554 = vadd.f32 0.0, %v553
        %v555 = vpop.f32.mrf.mxu0
        %v556 = vadd.f32 0.0, %v555
        %v557 = vpop.f32.mrf.mxu0
        %v558 = vadd.f32 0.0, %v557
        %v559 = vpop.f32.mrf.mxu0
        %v560 = vadd.f32 0.0, %v559
        %561 = vmatprep.mubr.bf16.mxu0 0
        %562 = vmatmul.mubr.bf16.gmra.mxu0 %v341
        %v563 = vpop.f32.mrf.mxu0
        %v564 = vadd.f32 0.0, %v563
        %v565 = vpop.f32.mrf.mxu0
        %v566 = vadd.f32 0.0, %v565
        %v567 = vpop.f32.mrf.mxu0
        %v568 = vadd.f32 0.0, %v567
        %v569 = vpop.f32.mrf.mxu0
        %v570 = vadd.f32 0.0, %v569
        %571 = vmatprep.mubr.bf16.mxu0 0
        %572 = vmatmul.mubr.bf16.gmra.mxu0 %v342
        %v573 = vpop.f32.mrf.mxu0
        %v574 = vadd.f32 0.0, %v573
        %v575 = vpop.f32.mrf.mxu0
        %v576 = vadd.f32 0.0, %v575
        %v577 = vpop.f32.mrf.mxu0
        %v578 = vadd.f32 0.0, %v577
        %v579 = vpop.f32.mrf.mxu0
        %v580 = vadd.f32 0.0, %v579
        %581 = vmatprep.mubr.bf16.mxu0 0
        %582 = vmatmul.mubr.bf16.gmra.mxu0 %v343
        %v583 = vpop.f32.mrf.mxu0
        %v584 = vadd.f32 0.0, %v583
        %v585 = vpop.f32.mrf.mxu0
        %v586 = vadd.f32 0.0, %v585
        %v587 = vpop.f32.mrf.mxu0
        %v588 = vpop.f32.mrf.mxu0
        %589 = vdwg.mxu0
        %590 = vmatprep.subr.bf16.mxu0 %v476
        %591 = vmatpush1.bf16.msra.mxu0 %v475
        %592 = vmatprep.subr.bf16.mxu0 %v472
        %593 = vmatpush1.bf16.msra.mxu0 %v471
        %594 = vmatprep.subr.bf16.mxu0 %v468
        %595 = vmatpush1.bf16.msra.mxu0 %v467
        %596 = vmatprep.subr.bf16.mxu0 %v464
        %597 = vmatpush1.bf16.msra.mxu0 %v463
        %598 = vmatprep.subr.bf16.mxu0 %v460
        %599 = vmatpush1.bf16.msra.mxu0 %v459
        %600 = vmatprep.subr.bf16.mxu0 %v456
        %601 = vmatpush1.bf16.msra.mxu0 %v455
        %602 = vmatprep.subr.bf16.mxu0 %v452
        %603 = vmatpush1.bf16.msra.mxu0 %v451
        %604 = vmatprep.subr.bf16.mxu0 %v448
        %605 = vmatpush1.bf16.msra.mxu0 %v447
        %606 = vmatprep.subr.bf16.mxu0 0
        %607 = vmatpush2.bf16.msra.mxu0 0
        %608 = vmatprep.subr.bf16.mxu0 0
        %609 = vmatpush2.bf16.msra.mxu0 0
        %610 = vmatprep.subr.bf16.mxu0 0
        %611 = vmatpush2.bf16.msra.mxu0 0
        %612 = vmatprep.subr.bf16.mxu0 0
        %613 = vmatpush2.bf16.msra.mxu0 0
        %614 = vmatprep.subr.bf16.mxu0 0
        %615 = vmatpush2.bf16.msra.mxu0 0
        %616 = vmatprep.subr.bf16.mxu0 0
        %617 = vmatpush2.bf16.msra.mxu0 0
        %618 = vmatprep.subr.bf16.mxu0 0
        %619 = vmatpush2.bf16.msra.mxu0 0
        %620 = vmatprep.subr.bf16.mxu0 0
        %621 = vmatpush2.bf16.msra.mxu0 0
        %622 = vmatprep.mubr.bf16.mxu0 0
        %623 = vmatmul.mubr.bf16.gmra.mxu0 %v339
        %v624 = vpop.f32.mrf.mxu0
        %v625 = vadd.f32 0.0, %v624
        %v626 = vpop.f32.mrf.mxu0
        %v627 = vadd.f32 0.0, %v626
        %v628 = vpop.f32.mrf.mxu0
        %v629 = vadd.f32 0.0, %v628
        %v630 = vpop.f32.mrf.mxu0
        %v631 = vadd.f32 0.0, %v630
        %632 = vmatprep.mubr.bf16.mxu0 0
        %633 = vmatmul.mubr.bf16.gmra.mxu0 %v340
        %v634 = vpop.f32.mrf.mxu0
        %v635 = vadd.f32 0.0, %v634
        %v636 = vpop.f32.mrf.mxu0
        %v637 = vadd.f32 0.0, %v636
        %v638 = vpop.f32.mrf.mxu0
        %v639 = vadd.f32 0.0, %v638
        %v640 = vpop.f32.mrf.mxu0
        %v641 = vadd.f32 0.0, %v640
        %642 = vmatprep.mubr.bf16.mxu0 0
        %643 = vmatmul.mubr.bf16.gmra.mxu0 %v341
        %v644 = vpop.f32.mrf.mxu0
        %v645 = vadd.f32 0.0, %v644
        %v646 = vpop.f32.mrf.mxu0
        %v647 = vadd.f32 0.0, %v646
        %v648 = vpop.f32.mrf.mxu0
        %v649 = vadd.f32 0.0, %v648
        %v650 = vpop.f32.mrf.mxu0
        %v651 = vadd.f32 0.0, %v650
        %652 = vmatprep.mubr.bf16.mxu0 0
        %653 = vmatmul.mubr.bf16.gmra.mxu0 %v342
        %v654 = vpop.f32.mrf.mxu0
        %v655 = vadd.f32 0.0, %v654
        %v656 = vpop.f32.mrf.mxu0
        %v657 = vadd.f32 0.0, %v656
        %v658 = vpop.f32.mrf.mxu0
        %v659 = vadd.f32 0.0, %v658
        %v660 = vpop.f32.mrf.mxu0
        %v661 = vadd.f32 0.0, %v660
        %662 = vmatprep.mubr.bf16.mxu0 0
        %663 = vmatmul.mubr.bf16.gmra.mxu0 %v343
        %v664 = vpop.f32.mrf.mxu0
        %v665 = vadd.f32 0.0, %v664
        %v666 = vpop.f32.mrf.mxu0
        %v667 = vadd.f32 0.0, %v666
        %v668 = vpop.f32.mrf.mxu0
        %v669 = vpop.f32.mrf.mxu0
        %670 = vdwg.mxu0
        %vm680 = vcmask 1046528
        %v681 = vrot.slane %v546, 1
        %v682 = vrot.slane %v550, 1
        %v683 = vsel %vm680, %v681, %v682
        %v684 = vrot.slane %v556, 1
        %v685 = vsel %vm680, %v682, %v684
        %v686 = vrot.slane %v560, 1
        %v687 = vsel %vm680, %v684, %v686
        %v688 = vrot.slane %v566, 1
        %v689 = vsel %vm680, %v686, %v688
        %v690 = vrot.slane %v570, 1
        %v691 = vsel %vm680, %v688, %v690
        %v692 = vrot.slane %v576, 1
        %v693 = vsel %vm680, %v690, %v692
        %v694 = vrot.slane %v580, 1
        %v695 = vsel %vm680, %v692, %v694
        %v696 = vrot.slane %v586, 1
        %v697 = vsel %vm680, %v694, %v696
        %v707 = vadd.f32 %v544, %v683
        %v708 = vadd.f32 %v548, %v685
        %v709 = vadd.f32 %v554, %v687
        %v710 = vadd.f32 %v558, %v689
        %v711 = vadd.f32 %v564, %v691
        %v712 = vadd.f32 %v568, %v693
        %v713 = vadd.f32 %v574, %v695
        %v714 = vadd.f32 %v578, %v697
        %v715 = vadd.f32 %v584, %v696
        %vm725 = vcmask 1045504
        %v726 = vrot.slane %v625, 2
        %v727 = vrot.slane %v629, 2
        %v728 = vsel %vm725, %v726, %v727
        %v729 = vrot.slane %v635, 2
        %v730 = vsel %vm725, %v727, %v729
        %v731 = vrot.slane %v639, 2
        %v732 = vsel %vm725, %v729, %v731
        %v733 = vrot.slane %v645, 2
        %v734 = vsel %vm725, %v731, %v733
        %v735 = vrot.slane %v649, 2
        %v736 = vsel %vm725, %v733, %v735
        %v737 = vrot.slane %v655, 2
        %v738 = vsel %vm725, %v735, %v737
        %v739 = vrot.slane %v659, 2
        %v740 = vsel %vm725, %v737, %v739
        %v741 = vrot.slane %v665, 2
        %v742 = vsel %vm725, %v739, %v741
        %v752 = vadd.f32 %v707, %v728
        %v753 = vadd.f32 %v708, %v730
        %v754 = vadd.f32 %v709, %v732
        %v755 = vadd.f32 %v710, %v734
        %v756 = vadd.f32 %v711, %v736
        %v757 = vadd.f32 %v712, %v738
        %v758 = vadd.f32 %v713, %v740
        %v759 = vadd.f32 %v714, %v742
        %v760 = vadd.f32 %v715, %v741
        %v761 = vld [vmem:[%s2] sm:$0x1]
        %v763 = vlaneseq
        %v764 = vshrl.u32 %v763, 7
        %v765 = vsub.s32 0, %v764
        %v766 = vrot.slane %v761, %v765
        %v768 = vadd.f32 %v752, %v766
        %v769 = vadd.f32 %v753, %v766
        %v770 = vadd.f32 %v754, %v766
        %v771 = vadd.f32 %v755, %v766
        %v772 = vadd.f32 %v756, %v766
        %v773 = vadd.f32 %v757, %v766
        %v774 = vadd.f32 %v758, %v766
        %v775 = vadd.f32 %v759, %v766
        %v776 = vadd.f32 %v760, %v766
        %v777 = vmax.f32 %v768, 0.0
        %v778 = vmax.f32 %v769, 0.0
        %v779 = vmax.f32 %v770, 0.0
        %v780 = vmax.f32 %v771, 0.0
        %v781 = vmax.f32 %v772, 0.0
        %v782 = vmax.f32 %v773, 0.0
        %v783 = vmax.f32 %v774, 0.0
        %v784 = vmax.f32 %v775, 0.0
        %v785 = vmax.f32 %v776, 0.0
        %s786 = smul.u32 %s25, 64
        %v787 = vlaneseq
        %v788 = vshrl.u32 %v787, 7
        %v789 = vadd.s32 %v788, 8
        %v790 = vadd.s32 %v788, 16
        %v791 = vadd.s32 %v788, 24
        %v792 = vadd.s32 %v788, 32
        %v793 = vadd.s32 %v788, 40
        %v794 = vadd.s32 %v788, 48
        %v795 = vadd.s32 %v788, 56
        %v796 = vadd.s32 %v788, 64
        %v797 = vstv %s786
        %v798 = vadd.s32 %v797, %v788
        %v799 = vadd.s32 %v797, %v789
        %v800 = vadd.s32 %v797, %v790
        %v801 = vadd.s32 %v797, %v791
        %v802 = vadd.s32 %v797, %v792
        %v803 = vadd.s32 %v797, %v793
        %v804 = vadd.s32 %v797, %v794
        %v805 = vadd.s32 %v797, %v795
        %v806 = vadd.s32 %v797, %v796
        %v807 = vsub.s32 %v798, 1
        %v808 = vsub.s32 %v799, 1
        %v809 = vsub.s32 %v800, 1
        %v810 = vsub.s32 %v801, 1
        %v811 = vsub.s32 %v802, 1
        %v812 = vsub.s32 %v803, 1
        %v813 = vsub.s32 %v804, 1
        %v814 = vsub.s32 %v805, 1
        %v815 = vsub.s32 %v806, 1
        %vm816 = vcmp.ge.s32.totalorder %v807, 0
        %vm817 = vcmp.ge.s32.totalorder %v808, 0
        %vm818 = vcmp.ge.s32.totalorder %v809, 0
        %vm819 = vcmp.ge.s32.totalorder %v810, 0
        %vm820 = vcmp.ge.s32.totalorder %v811, 0
        %vm821 = vcmp.ge.s32.totalorder %v812, 0
        %vm822 = vcmp.ge.s32.totalorder %v813, 0
        %vm823 = vcmp.ge.s32.totalorder %v814, 0
        %vm824 = vcmp.ge.s32.totalorder %v815, 0
        %vm825 = vcmp.lt.s32.totalorder %v807, 200
        %vm826 = vcmp.lt.s32.totalorder %v808, 200
        %vm827 = vcmp.lt.s32.totalorder %v809, 200
        %vm828 = vcmp.lt.s32.totalorder %v810, 200
        %vm829 = vcmp.lt.s32.totalorder %v811, 200
        %vm830 = vcmp.lt.s32.totalorder %v812, 200
        %vm831 = vcmp.lt.s32.totalorder %v813, 200
        %vm832 = vcmp.lt.s32.totalorder %v814, 200
        %vm833 = vcmp.lt.s32.totalorder %v815, 200
        %vm834 = vmand %vm816, %vm825
        %vm835 = vmand %vm817, %vm826
        %vm836 = vmand %vm818, %vm827
        %vm837 = vmand %vm819, %vm828
        %vm838 = vmand %vm820, %vm829
        %vm839 = vmand %vm821, %vm830
        %vm840 = vmand %vm822, %vm831
        %vm841 = vmand %vm823, %vm832
        %vm842 = vmand %vm824, %vm833
        %v843 = vsel %vm834, %v777, 0.0
        %v844 = vsel %vm835, %v778, 0.0
        %v845 = vsel %vm836, %v779, 0.0
        %v846 = vsel %vm837, %v780, 0.0
        %v847 = vsel %vm838, %v781, 0.0
        %v848 = vsel %vm839, %v782, 0.0
        %v849 = vsel %vm840, %v783, 0.0
        %v850 = vsel %vm841, %v784, 0.0
        %v851 = vsel %vm842, %v785, 0.0
        %v852 = vpack.c.bf16 %v844, %v843
        %v853 = vpack.c.bf16 %v846, %v845
        %v854 = vpack.c.bf16 %v848, %v847
        %v855 = vpack.c.bf16 %v850, %v849
        %v856 = vpack.c.bf16 %v851, %v851
        %v857 = vld [vmem:[%s3] sm:$0xff]
        %v858 = vld [vmem:[%s3 + $0x8] sm:$0xf]
        %v859 = vld [vmem:[%s3 + $0xc] sm:$0xff]
        %v860 = vld [vmem:[%s3 + $0x14] sm:$0xf]
        %v861 = vld [vmem:[%s3 + $0x18] sm:$0xff]
        %v862 = vld [vmem:[%s3 + $0x20] sm:$0xf]
        %v863 = vld [vmem:[%s3 + $0x24] sm:$0xff]
        %v864 = vld [vmem:[%s3 + $0x2c] sm:$0xf]
        %v865 = vld [vmem:[%s3 + $0x30] sm:$0xff]
        %v866 = vld [vmem:[%s3 + $0x38] sm:$0xf]
        %v867 = vld [vmem:[%s3 + $0x3c] sm:$0xff]
        %v868 = vld [vmem:[%s3 + $0x44] sm:$0xf]
        %v869 = vld [vmem:[%s3 + $0x48] sm:$0xff]
        %v870 = vld [vmem:[%s3 + $0x50] sm:$0xf]
        %v871 = vld [vmem:[%s3 + $0x54] sm:$0xff]
        %v872 = vld [vmem:[%s3 + $0x5c] sm:$0xf]
        %v873 = vld [vmem:[%s3 + $0x60] sm:$0xff]
        %v874 = vld [vmem:[%s3 + $0x68] sm:$0xf]
        %v875 = vld [vmem:[%s3 + $0x6c] sm:$0xff]
        %v876 = vld [vmem:[%s3 + $0x74] sm:$0xf]
        %v877 = vld [vmem:[%s3 + $0x78] sm:$0xff]
        %v878 = vld [vmem:[%s3 + $0x80] sm:$0xf]
        %v879 = vld [vmem:[%s3 + $0x84] sm:$0xff]
        %v880 = vld [vmem:[%s3 + $0x8c] sm:$0xf]
        %v881 = vld [vmem:[%s3 + $0x90] sm:$0xff]
        %v882 = vld [vmem:[%s3 + $0x98] sm:$0xf]
        %v883 = vld [vmem:[%s3 + $0x9c] sm:$0xff]
        %v884 = vld [vmem:[%s3 + $0xa4] sm:$0xf]
        %v885 = vld [vmem:[%s3 + $0xa8] sm:$0xff]
        %v886 = vld [vmem:[%s3 + $0xb0] sm:$0xf]
        %v887 = vld [vmem:[%s3 + $0xb4] sm:$0xff]
        %v888 = vld [vmem:[%s3 + $0xbc] sm:$0xf]
        %v921 = vunpack.c.l.b16 %v857
        %v922 = vunpack.c.h.b16 %v857
        %v923 = vunpack.c.l.b16 %v858
        %v924 = vunpack.c.l.b16 %v859
        %v925 = vunpack.c.h.b16 %v859
        %v926 = vunpack.c.l.b16 %v860
        %v927 = vunpack.c.l.b16 %v861
        %v928 = vunpack.c.h.b16 %v861
        %v929 = vunpack.c.l.b16 %v862
        %v930 = vunpack.c.l.b16 %v863
        %v931 = vunpack.c.h.b16 %v863
        %v932 = vunpack.c.l.b16 %v864
        %v933 = vunpack.c.l.b16 %v865
        %v934 = vunpack.c.h.b16 %v865
        %v935 = vunpack.c.l.b16 %v866
        %v936 = vunpack.c.l.b16 %v867
        %v937 = vunpack.c.h.b16 %v867
        %v938 = vunpack.c.l.b16 %v868
        %v939 = vunpack.c.l.b16 %v869
        %v940 = vunpack.c.h.b16 %v869
        %v941 = vunpack.c.l.b16 %v870
        %v942 = vunpack.c.l.b16 %v871
        %v943 = vunpack.c.h.b16 %v871
        %v944 = vunpack.c.l.b16 %v872
        %v945 = vunpack.c.l.b16 %v873
        %v946 = vunpack.c.h.b16 %v873
        %v947 = vunpack.c.l.b16 %v874
        %v948 = vunpack.c.l.b16 %v875
        %v949 = vunpack.c.h.b16 %v875
        %v950 = vunpack.c.l.b16 %v876
        %v951 = vunpack.c.l.b16 %v877
        %v952 = vunpack.c.h.b16 %v877
        %v953 = vunpack.c.l.b16 %v878
        %v954 = vunpack.c.l.b16 %v879
        %v955 = vunpack.c.h.b16 %v879
        %v956 = vunpack.c.l.b16 %v880
        %v957 = vunpack.c.l.b16 %v881
        %v958 = vunpack.c.h.b16 %v881
        %v959 = vunpack.c.l.b16 %v882
        %v960 = vunpack.c.l.b16 %v883
        %v961 = vunpack.c.h.b16 %v883
        %v962 = vunpack.c.l.b16 %v884
        %v963 = vunpack.c.l.b16 %v885
        %v964 = vunpack.c.h.b16 %v885
        %v965 = vunpack.c.l.b16 %v886
        %v966 = vunpack.c.l.b16 %v887
        %v967 = vunpack.c.h.b16 %v887
        %v968 = vunpack.c.l.b16 %v888
        %v969 = vpack.c.b16 %v924, %v921
        %v970 = vpack.c.b16 %v925, %v922
        %v971 = vpack.c.b16 %v926, %v923
        %v972 = vpack.c.b16 %v930, %v927
        %v973 = vpack.c.b16 %v931, %v928
        %v974 = vpack.c.b16 %v932, %v929
        %v975 = vpack.c.b16 %v936, %v933
        %v976 = vpack.c.b16 %v937, %v934
        %v977 = vpack.c.b16 %v938, %v935
        %v978 = vpack.c.b16 %v942, %v939
        %v979 = vpack.c.b16 %v943, %v940
        %v980 = vpack.c.b16 %v944, %v941
        %v981 = vpack.c.b16 %v948, %v945
        %v982 = vpack.c.b16 %v949, %v946
        %v983 = vpack.c.b16 %v950, %v947
        %v984 = vpack.c.b16 %v954, %v951
        %v985 = vpack.c.b16 %v955, %v952
        %v986 = vpack.c.b16 %v956, %v953
        %v987 = vpack.c.b16 %v960, %v957
        %v988 = vpack.c.b16 %v961, %v958
        %v989 = vpack.c.b16 %v962, %v959
        %v990 = vpack.c.b16 %v966, %v963
        %v991 = vpack.c.b16 %v967, %v964
        %v992 = vpack.c.b16 %v968, %v965
        %1017 = vmatprep.subr.bf16.mxu0 %v991
        %1018 = vmatpush1.bf16.msra.mxu0 %v990
        %1019 = vmatprep.subr.bf16.mxu0 %v988
        %1020 = vmatpush1.bf16.msra.mxu0 %v987
        %1021 = vmatprep.subr.bf16.mxu0 %v985
        %1022 = vmatpush1.bf16.msra.mxu0 %v984
        %1023 = vmatprep.subr.bf16.mxu0 %v982
        %1024 = vmatpush1.bf16.msra.mxu0 %v981
        %1025 = vmatprep.subr.bf16.mxu0 %v979
        %1026 = vmatpush1.bf16.msra.mxu0 %v978
        %1027 = vmatprep.subr.bf16.mxu0 %v976
        %1028 = vmatpush1.bf16.msra.mxu0 %v975
        %1029 = vmatprep.subr.bf16.mxu0 %v973
        %1030 = vmatpush1.bf16.msra.mxu0 %v972
        %1031 = vmatprep.subr.bf16.mxu0 %v970
        %1032 = vmatpush1.bf16.msra.mxu0 %v969
        %1033 = vmatprep.subr.bf16.mxu0 0
        %1034 = vmatpush2.bf16.msra.mxu0 0
        %1035 = vmatprep.subr.bf16.mxu0 0
        %1036 = vmatpush2.bf16.msra.mxu0 0
        %1037 = vmatprep.subr.bf16.mxu0 0
        %1038 = vmatpush2.bf16.msra.mxu0 0
        %1039 = vmatprep.subr.bf16.mxu0 0
        %1040 = vmatpush2.bf16.msra.mxu0 0
        %1041 = vmatprep.subr.bf16.mxu0 0
        %1042 = vmatpush2.bf16.msra.mxu0 0
        %1043 = vmatprep.subr.bf16.mxu0 0
        %1044 = vmatpush2.bf16.msra.mxu0 0
        %1045 = vmatprep.subr.bf16.mxu0 0
        %1046 = vmatpush2.bf16.msra.mxu0 0
        %1047 = vmatprep.subr.bf16.mxu0 0
        %1048 = vmatpush2.bf16.msra.mxu0 0
        %1049 = vmatprep.mubr.bf16.mxu0 0
        %1050 = vmatmul.mubr.bf16.gmra.mxu0 %v852
        %v1051 = vpop.f32.mrf.mxu0
        %v1052 = vadd.f32 0.0, %v1051
        %v1053 = vpop.f32.mrf.mxu0
        %v1054 = vadd.f32 0.0, %v1053
        %v1055 = vpop.f32.mrf.mxu0
        %v1056 = vadd.f32 0.0, %v1055
        %v1057 = vpop.f32.mrf.mxu0
        %v1058 = vadd.f32 0.0, %v1057
        %1059 = vmatprep.mubr.bf16.mxu0 0
        %1060 = vmatmul.mubr.bf16.gmra.mxu0 %v853
        %v1061 = vpop.f32.mrf.mxu0
        %v1062 = vadd.f32 0.0, %v1061
        %v1063 = vpop.f32.mrf.mxu0
        %v1064 = vadd.f32 0.0, %v1063
        %v1065 = vpop.f32.mrf.mxu0
        %v1066 = vadd.f32 0.0, %v1065
        %v1067 = vpop.f32.mrf.mxu0
        %v1068 = vadd.f32 0.0, %v1067
        %1069 = vmatprep.mubr.bf16.mxu0 0
        %1070 = vmatmul.mubr.bf16.gmra.mxu0 %v854
        %v1071 = vpop.f32.mrf.mxu0
        %v1072 = vadd.f32 0.0, %v1071
        %v1073 = vpop.f32.mrf.mxu0
        %v1074 = vadd.f32 0.0, %v1073
        %v1075 = vpop.f32.mrf.mxu0
        %v1076 = vadd.f32 0.0, %v1075
        %v1077 = vpop.f32.mrf.mxu0
        %v1078 = vadd.f32 0.0, %v1077
        %1079 = vmatprep.mubr.bf16.mxu0 0
        %1080 = vmatmul.mubr.bf16.gmra.mxu0 %v855
        %v1081 = vpop.f32.mrf.mxu0
        %v1082 = vadd.f32 0.0, %v1081
        %v1083 = vpop.f32.mrf.mxu0
        %v1084 = vadd.f32 0.0, %v1083
        %v1085 = vpop.f32.mrf.mxu0
        %v1086 = vadd.f32 0.0, %v1085
        %v1087 = vpop.f32.mrf.mxu0
        %v1088 = vadd.f32 0.0, %v1087
        %1089 = vmatprep.mubr.bf16.mxu0 0
        %1090 = vmatmul.mubr.bf16.gmra.mxu0 %v856
        %v1091 = vpop.f32.mrf.mxu0
        %v1092 = vpop.f32.mrf.mxu0
        %v1093 = vadd.f32 0.0, %v1092
        %v1094 = vpop.f32.mrf.mxu0
        %v1095 = vpop.f32.mrf.mxu0
        %1096 = vdwg.mxu0
        %1097 = vmatprep.subr.bf16.mxu0 0
        %1098 = vmatpush1.bf16.msra.mxu0 %v992
        %1099 = vmatprep.subr.bf16.mxu0 0
        %1100 = vmatpush1.bf16.msra.mxu0 %v989
        %1101 = vmatprep.subr.bf16.mxu0 0
        %1102 = vmatpush1.bf16.msra.mxu0 %v986
        %1103 = vmatprep.subr.bf16.mxu0 0
        %1104 = vmatpush1.bf16.msra.mxu0 %v983
        %1105 = vmatprep.subr.bf16.mxu0 0
        %1106 = vmatpush1.bf16.msra.mxu0 %v980
        %1107 = vmatprep.subr.bf16.mxu0 0
        %1108 = vmatpush1.bf16.msra.mxu0 %v977
        %1109 = vmatprep.subr.bf16.mxu0 0
        %1110 = vmatpush1.bf16.msra.mxu0 %v974
        %1111 = vmatprep.subr.bf16.mxu0 0
        %1112 = vmatpush1.bf16.msra.mxu0 %v971
        %1113 = vmatprep.subr.bf16.mxu0 0
        %1114 = vmatpush2.bf16.msra.mxu0 0
        %1115 = vmatprep.subr.bf16.mxu0 0
        %1116 = vmatpush2.bf16.msra.mxu0 0
        %1117 = vmatprep.subr.bf16.mxu0 0
        %1118 = vmatpush2.bf16.msra.mxu0 0
        %1119 = vmatprep.subr.bf16.mxu0 0
        %1120 = vmatpush2.bf16.msra.mxu0 0
        %1121 = vmatprep.subr.bf16.mxu0 0
        %1122 = vmatpush2.bf16.msra.mxu0 0
        %1123 = vmatprep.subr.bf16.mxu0 0
        %1124 = vmatpush2.bf16.msra.mxu0 0
        %1125 = vmatprep.subr.bf16.mxu0 0
        %1126 = vmatpush2.bf16.msra.mxu0 0
        %1127 = vmatprep.subr.bf16.mxu0 0
        %1128 = vmatpush2.bf16.msra.mxu0 0
        %1129 = vmatprep.mubr.bf16.mxu0 0
        %1130 = vmatmul.mubr.bf16.gmra.mxu0 %v852
        %v1131 = vpop.f32.mrf.mxu0
        %v1132 = vadd.f32 0.0, %v1131
        %v1133 = vpop.f32.mrf.mxu0
        %v1134 = vpop.f32.mrf.mxu0
        %v1135 = vadd.f32 0.0, %v1134
        %v1136 = vpop.f32.mrf.mxu0
        %1137 = vmatprep.mubr.bf16.mxu0 0
        %1138 = vmatmul.mubr.bf16.gmra.mxu0 %v853
        %v1139 = vpop.f32.mrf.mxu0
        %v1140 = vadd.f32 0.0, %v1139
        %v1141 = vpop.f32.mrf.mxu0
        %v1142 = vpop.f32.mrf.mxu0
        %v1143 = vadd.f32 0.0, %v1142
        %v1144 = vpop.f32.mrf.mxu0
        %1145 = vmatprep.mubr.bf16.mxu0 0
        %1146 = vmatmul.mubr.bf16.gmra.mxu0 %v854
        %v1147 = vpop.f32.mrf.mxu0
        %v1148 = vadd.f32 0.0, %v1147
        %v1149 = vpop.f32.mrf.mxu0
        %v1150 = vpop.f32.mrf.mxu0
        %v1151 = vadd.f32 0.0, %v1150
        %v1152 = vpop.f32.mrf.mxu0
        %1153 = vmatprep.mubr.bf16.mxu0 0
        %1154 = vmatmul.mubr.bf16.gmra.mxu0 %v855
        %v1155 = vpop.f32.mrf.mxu0
        %v1156 = vadd.f32 0.0, %v1155
        %v1157 = vpop.f32.mrf.mxu0
        %v1158 = vpop.f32.mrf.mxu0
        %v1159 = vadd.f32 0.0, %v1158
        %v1160 = vpop.f32.mrf.mxu0
        %1161 = vmatprep.mubr.bf16.mxu0 0
        %1162 = vmatmul.mubr.bf16.gmra.mxu0 %v856
        %v1163 = vpop.f32.mrf.mxu0
        %v1164 = vadd.f32 0.0, %v1163
        %v1165 = vpop.f32.mrf.mxu0
        %v1166 = vpop.f32.mrf.mxu0
        %v1167 = vpop.f32.mrf.mxu0
        %1168 = vdwg.mxu0
        %v1178 = vrot.slane %v1054, 1
        %v1179 = vrot.slane %v1058, 1
        %v1180 = vsel %vm680, %v1178, %v1179
        %v1181 = vrot.slane %v1064, 1
        %v1182 = vsel %vm680, %v1179, %v1181
        %v1183 = vrot.slane %v1068, 1
        %v1184 = vsel %vm680, %v1181, %v1183
        %v1185 = vrot.slane %v1074, 1
        %v1186 = vsel %vm680, %v1183, %v1185
        %v1187 = vrot.slane %v1078, 1
        %v1188 = vsel %vm680, %v1185, %v1187
        %v1189 = vrot.slane %v1084, 1
        %v1190 = vsel %vm680, %v1187, %v1189
        %v1191 = vrot.slane %v1088, 1
        %v1192 = vsel %vm680, %v1189, %v1191
        %v1193 = vrot.slane %v1093, 1
        %v1194 = vsel %vm680, %v1191, %v1193
        %v1203 = vadd.f32 %v1052, %v1180
        %v1204 = vadd.f32 %v1056, %v1182
        %v1205 = vadd.f32 %v1062, %v1184
        %v1206 = vadd.f32 %v1066, %v1186
        %v1207 = vadd.f32 %v1072, %v1188
        %v1208 = vadd.f32 %v1076, %v1190
        %v1209 = vadd.f32 %v1082, %v1192
        %v1210 = vadd.f32 %v1086, %v1194
        %v1220 = vrot.slane %v1132, 2
        %v1221 = vrot.slane %v1135, 2
        %v1222 = vsel %vm725, %v1220, %v1221
        %v1223 = vrot.slane %v1140, 2
        %v1224 = vsel %vm725, %v1221, %v1223
        %v1225 = vrot.slane %v1143, 2
        %v1226 = vsel %vm725, %v1223, %v1225
        %v1227 = vrot.slane %v1148, 2
        %v1228 = vsel %vm725, %v1225, %v1227
        %v1229 = vrot.slane %v1151, 2
        %v1230 = vsel %vm725, %v1227, %v1229
        %v1231 = vrot.slane %v1156, 2
        %v1232 = vsel %vm725, %v1229, %v1231
        %v1233 = vrot.slane %v1159, 2
        %v1234 = vsel %vm725, %v1231, %v1233
        %v1235 = vrot.slane %v1164, 2
        %v1236 = vsel %vm725, %v1233, %v1235
        %v1245 = vadd.f32 %v1203, %v1222
        %v1246 = vadd.f32 %v1204, %v1224
        %v1247 = vadd.f32 %v1205, %v1226
        %v1248 = vadd.f32 %v1206, %v1228
        %v1249 = vadd.f32 %v1207, %v1230
        %v1250 = vadd.f32 %v1208, %v1232
        %v1251 = vadd.f32 %v1209, %v1234
        %v1252 = vadd.f32 %v1210, %v1236
        %v1253 = vld [vmem:[%s4] sm:$0x1]
        %v1255 = vlaneseq
        %v1256 = vshrl.u32 %v1255, 7
        %v1257 = vsub.s32 0, %v1256
        %v1258 = vrot.slane %v1253, %v1257
        %v1260 = vadd.f32 %v1245, %v1258
        %v1261 = vadd.f32 %v1246, %v1258
        %v1262 = vadd.f32 %v1247, %v1258
        %v1263 = vadd.f32 %v1248, %v1258
        %v1264 = vadd.f32 %v1249, %v1258
        %v1265 = vadd.f32 %v1250, %v1258
        %v1266 = vadd.f32 %v1251, %v1258
        %v1267 = vadd.f32 %v1252, %v1258
        %v1268 = vld [vmem:[%s5] sm:$0x1]
        %v1270 = vlaneseq
        %v1271 = vshrl.u32 %v1270, 7
        %v1272 = vsub.s32 0, %v1271
        %v1273 = vrot.slane %v1268, %v1272
        %v1275 = vadd.f32 %v627, %v1273
        %v1276 = vadd.f32 %v631, %v1273
        %v1277 = vadd.f32 %v637, %v1273
        %v1278 = vadd.f32 %v641, %v1273
        %v1279 = vadd.f32 %v647, %v1273
        %v1280 = vadd.f32 %v651, %v1273
        %v1281 = vadd.f32 %v657, %v1273
        %v1282 = vadd.f32 %v661, %v1273
        %v1283 = vadd.f32 %v667, %v1273
        %v1293 = vrot.slane %v1275, 2
        %v1294 = vrot.slane %v1276, 2
        %v1295 = vsel %vm725, %v1293, %v1294
        %v1296 = vrot.slane %v1277, 2
        %v1297 = vsel %vm725, %v1294, %v1296
        %v1298 = vrot.slane %v1278, 2
        %v1299 = vsel %vm725, %v1296, %v1298
        %v1300 = vrot.slane %v1279, 2
        %v1301 = vsel %vm725, %v1298, %v1300
        %v1302 = vrot.slane %v1280, 2
        %v1303 = vsel %vm725, %v1300, %v1302
        %v1304 = vrot.slane %v1281, 2
        %v1305 = vsel %vm725, %v1302, %v1304
        %v1306 = vrot.slane %v1282, 2
        %v1307 = vsel %vm725, %v1304, %v1306
        %v1308 = vrot.slane %v1283, 2
        %v1309 = vsel %vm725, %v1306, %v1308
        %v1318 = vadd.f32 %v1260, %v1295
        %v1319 = vadd.f32 %v1261, %v1297
        %v1320 = vadd.f32 %v1262, %v1299
        %v1321 = vadd.f32 %v1263, %v1301
        %v1322 = vadd.f32 %v1264, %v1303
        %v1323 = vadd.f32 %v1265, %v1305
        %v1324 = vadd.f32 %v1266, %v1307
        %v1325 = vadd.f32 %v1267, %v1309
        %v1326 = vmax.f32 %v1318, 0.0
        %v1327 = vmax.f32 %v1319, 0.0
        %v1328 = vmax.f32 %v1320, 0.0
        %v1329 = vmax.f32 %v1321, 0.0
        %v1330 = vmax.f32 %v1322, 0.0
        %v1331 = vmax.f32 %v1323, 0.0
        %v1332 = vmax.f32 %v1324, 0.0
        %v1333 = vmax.f32 %v1325, 0.0
        %1334 = vst [vmem:[%s268] sm:$0xff] %v1326
        %1335 = vst [vmem:[%s268 + $0x8] sm:$0xff] %v1327
        %1336 = vst [vmem:[%s268 + $0x10] sm:$0xff] %v1328
        %1337 = vst [vmem:[%s268 + $0x18] sm:$0xff] %v1329
        %1338 = vst [vmem:[%s268 + $0x20] sm:$0xff] %v1330
        %1339 = vst [vmem:[%s268 + $0x28] sm:$0xff] %v1331
        %1340 = vst [vmem:[%s268 + $0x30] sm:$0xff] %v1332
        %1341 = vst [vmem:[%s268 + $0x38] sm:$0xff] %v1333
        %s1342 = sand.u32 %s175, 1
        %s1343 = scalar_lea.sflag [#allocation3], %s1342
        %s1344 = sand.u32 %s175, 1
        %s1345 = smul.addr %s1344, 64
        %s1346 = scalar_lea.vmem [#allocation2], %s1345
        // Predicated region
        $region45: #{tpu_custom_call.1} parent=43 // pred_check
          %p1347 = pneg %p185
        $region46: #{tpu_custom_call.1} parent=43 // pred_check_branch
          %1349 = sbr.rel (%p1347) target = $region48
        $region47: #{tpu_custom_call.1} parent=43 // pred_region
          %s1350 = smul.u32 8, %s25
          %s1352 = ssub.s32 1024, 1024
          %1353 = vsyncadd %s1343, %s1352
          %s1354 = smul.addr %s24, 32
          %s1355 = sadd.s32 %s1350, %s1354
          %s1356 = smul.addr %s1355, 128
          %s1357 = scalar_lea.hbm %s6, %s1356
          %s1358 = sshll.u32 %s1346, 4
          %s1359 = int_to_ptr.vmem [resolvable:$true] %s1358
          %1364 = dma.vmem_to_hbm [thread:$0]  %s1359, 1024, %s1357, %s1343, 128, 128, 8
        $region48: #{tpu_custom_call.1} parent=43 // pred_fallthru
          _
      $region44: #{tpu_custom_call.1} parent=5 // pred_fallthru
        _
      %p1365 = scmp.le.s32.totalorder 2, %s15
      // Predicated region
      $region49: #{tpu_custom_call.1} parent=5 // pred_check
        %p1366 = pneg %p1365
      $region50: #{tpu_custom_call.1} parent=5 // pred_check_branch
        %1368 = sbr.rel (%p1366) target = $region52
      $region51: #{tpu_custom_call.1} parent=5 // pred_region
        %s1369 = ssub.s32 %s15, 2
        // Predicated region
        $region53: #{tpu_custom_call.1} parent=51 // pred_check
          %p1370 = pneg %p191
        $region54: #{tpu_custom_call.1} parent=51 // pred_check_branch
          %1372 = sbr.rel (%p1370) target = $region56
        $region55: #{tpu_custom_call.1} parent=51 // pred_region
          %s1373 = sand.u32 %s176, 1
          %s1374 = scalar_lea.sflag [#allocation3], %s1373
          %s1375 = sand.u32 %s176, 1
          %s1376 = smul.addr %s1375, 64
          %s1377 = scalar_lea.vmem [#allocation2], %s1376
          %1378 = dma.done %s1374, 1024
        $region56: #{tpu_custom_call.1} parent=51 // pred_fallthru
          _
      $region52: #{tpu_custom_call.1} parent=5 // pred_fallthru
        _
    $region6: #{tpu_custom_call.1} parent=1 // loop_footer
      %s19 = sadd.s32 1, %s15
    $region7: #{tpu_custom_call.1} parent=1 // loop_footer_branch
      %14 = sbr.rel target = $region3
    $region8: #{tpu_custom_call.1} parent=1 // loop_exit
      _
    %1379 = vsyncpa [#allocation3], 1
    %s1380 = scalar_lea.sflag [#allocation3], 1
    %1381 = vsyncpa %s1380, 1

</llo_original>
